<compile_context>
chip_gen: v7x
topology: tpu7x:2x2x1
jax: 0.10.0
libtpu: 0.0.40
codegen_flags: <defaults>
</compile_context>

<pallas_src>
import jax
import jax.numpy as jnp
from jax.experimental import pallas as pl
from jax.experimental.pallas import tpu as pltpu


def _attention_kernel(g_ref, x_ref, wg_ref, wx_ref, aux_ref, bp_ref, out_ref):
    # Tile layouts (channels on sublanes, spatial on lanes):
    #   g_ref  : (F_g, t)     x_ref  : (F_l, t)        -- storage dtype (bf16 or f32)
    #   wg_ref : (F_int, F_g) wx_ref : (F_int, F_l)    -- same dtype (MXU operands)
    #   aux_ref: (F_int, 2) f32: col0 = b_g + b_x (BN folded), col1 = psi weight
    #   bp_ref : (1, 1) f32 in SMEM: psi bias (BN folded)
    #   out    : (F_l, t)
    g = g_ref[...]
    x = x_ref[...]

    # Fused W_g(g) + W_x(x): two back-to-back MXU dots accumulating in f32.
    a = jnp.dot(wg_ref[...], g, preferred_element_type=jnp.float32)
    a = a + jnp.dot(wx_ref[...], x, preferred_element_type=jnp.float32)

    b_gx = aux_ref[:, 0:1]                     # (F_int, 1) f32
    wp = aux_ref[:, 1:2]                       # (F_int, 1) f32
    a = jnp.maximum(a + b_gx, 0.0)             # (F_int, t) f32, ReLU

    # psi: 1x1 conv down to one channel (VPU mul + sublane reduce) + bias, sigmoid. f32.
    p = jnp.sum(a * wp, axis=0, keepdims=True) + bp_ref[0, 0]    # (1, t)
    psi = jax.nn.sigmoid(p)

    # Gate x by psi (broadcast over channels); lane-dense store in out dtype.
    out_ref[...] = (x.astype(jnp.float32) * psi).astype(out_ref.dtype)


def _fold_bn(w, b, gamma, beta, mean, var, eps=1e-5):
    """Fold inference-mode BatchNorm into a 1x1 conv given as (Cin, Cout) weight."""
    scale = gamma / jnp.sqrt(var + eps)          # (Cout,)
    w_f = w * scale[None, :]                     # (Cin, Cout)
    b_f = (b - mean) * scale + beta              # (Cout,)
    return w_f, b_f


def _vmem_capacity_bytes():
    """Per-core VMEM capacity; conservative fallback (= v7x) if the query fails."""
    try:
        return int(pltpu.get_tpu_info().vmem_capacity_bytes)
    except Exception:
        return 64 << 20


def _pick_spatial_tile(hw_padded, n_batch, bytes_per_col, budget_bytes, max_tile=8192):
    """Largest multiple-of-128 divisor of hw_padded that fits the VMEM budget while
    leaving enough (parallel) grid steps to keep both v7x TensorCores busy."""
    cap_cols = max(128, budget_bytes // max(bytes_per_col, 1))
    cap = max(128, min(max_tile, hw_padded, (cap_cols // 128) * 128))
    candidates = [t for t in range(128, cap + 1, 128) if hw_padded % t == 0]
    if not candidates:
        candidates = [128]
    max_steps = n_batch * (hw_padded // 128)
    min_steps = min(4, max_steps)
    ok = [t for t in candidates if n_batch * (hw_padded // t) >= min_steps]
    return max(ok) if ok else min(candidates)


def attention_block(g, x, params, *, storage_dtype=jnp.bfloat16, out_dtype=None,
                    max_spatial_tile=8192):
    """g, x: NCHW. Returns x * psi (NCHW), matching Attention_block.forward (eval mode)."""
    N, F_g, H, W = g.shape
    Nx, F_l, Hx, Wx = x.shape
    assert (N, H, W) == (Nx, Hx, Wx)
    F_int = params["wg"].shape[1]
    HW = H * W

    storage_dtype = jnp.dtype(storage_dtype)
    out_dtype = jnp.dtype(out_dtype) if out_dtype is not None else storage_dtype

    # ---- fold inference-mode BN into the three 1x1 convs (tiny wrapper-side math) ----
    wg, bg = _fold_bn(params["wg"], params["bg"], params["bn_g_gamma"], params["bn_g_beta"],
                      params["bn_g_mean"], params["bn_g_var"])
    wx, bx = _fold_bn(params["wx"], params["bx"], params["bn_x_gamma"], params["bn_x_beta"],
                      params["bn_x_mean"], params["bn_x_var"])
    wp, bp = _fold_bn(params["wp"], params["bp"], params["bn_p_gamma"], params["bn_p_beta"],
                      params["bn_p_mean"], params["bn_p_var"])

    # MXU operands in the activation storage dtype (bf16 -> single-pass MXU on v6e/v7x).
    wg_t = wg.T.astype(storage_dtype)                            # (F_int, F_g)
    wx_t = wx.T.astype(storage_dtype)                            # (F_int, F_l)
    # Consolidated small operands (f32, epilogue precision):
    aux = jnp.stack([bg + bx, wp.reshape(F_int)], axis=1).astype(jnp.float32)   # (F_int, 2)
    bp_s = bp.reshape(1, 1).astype(jnp.float32)                  # SMEM scalar

    # ---- free reshape to (N, C, H*W); cast to storage dtype; pad lanes to 128 ----
    g3 = g.reshape(N, F_g, HW).astype(storage_dtype)
    x3 = x.reshape(N, F_l, HW).astype(storage_dtype)
    HWp = ((HW + 127) // 128) * 128
    if HWp != HW:
        pad = ((0, 0), (0, 0), (0, HWp - HW))
        g3 = jnp.pad(g3, pad)
        x3 = jnp.pad(x3, pad)

    # ---- generation-aware tile sizing + explicit VMEM limit ----
    vmem_cap = _vmem_capacity_bytes()
    tile_budget = min(vmem_cap // 4, 32 << 20)       # ~16 MiB on v7x (64 MiB/TC), 32 MiB on v5e/v6e
    sb = storage_dtype.itemsize
    ob = out_dtype.itemsize
    # Double-buffered g/x/out tiles + f32 intermediates (a, x cast, psi rows) per lane column.
    bytes_per_col = (2 * F_g * sb + 2 * F_l * sb + 2 * F_l * ob
                     + 4 * (F_int + F_l + 4))
    fixed = 2 * (F_int * (F_g + F_l) * sb + F_int * 2 * 4) + (64 << 10)   # weights/aux + slack
    budget = int(0.8 * max(tile_budget - fixed, 128 * bytes_per_col))
    t = _pick_spatial_tile(HWp, N, bytes_per_col, budget, max_tile=max_spatial_tile)
    grid = (N, HWp // t)

    est_bytes = t * bytes_per_col + fixed
    vmem_limit = int(min(int(vmem_cap * 0.9), max(2 * est_bytes, 16 << 20)))

    # Donate x into the output when layouts/dtypes match (saves an HBM allocation).
    alias = {1: 0} if out_dtype == storage_dtype else {}

    out3 = pl.pallas_call(
        _attention_kernel,
        out_shape=jax.ShapeDtypeStruct((N, F_l, HWp), out_dtype),
        grid_spec=pltpu.PrefetchScalarGridSpec(
            num_scalar_prefetch=0,
            grid=grid,
            in_specs=[
                pl.BlockSpec((None, F_g, t), lambda n, j: (n, 0, j)),    # g tile
                pl.BlockSpec((None, F_l, t), lambda n, j: (n, 0, j)),    # x tile
                pl.BlockSpec((F_int, F_g), lambda n, j: (0, 0)),         # W_g^T (BN folded)
                pl.BlockSpec((F_int, F_l), lambda n, j: (0, 0)),         # W_x^T (BN folded)
                pl.BlockSpec((F_int, 2), lambda n, j: (0, 0)),           # [b_g+b_x | w_psi]
                pl.BlockSpec(memory_space=pltpu.MemorySpace.SMEM),       # psi bias scalar
            ],
            out_specs=pl.BlockSpec((None, F_l, t), lambda n, j: (n, 0, j)),
        ),
        compiler_params=pltpu.CompilerParams(
            dimension_semantics=("parallel", "parallel"),
            vmem_limit_bytes=vmem_limit),
        input_output_aliases=alias,
    )(g3, x3, wg_t, wx_t, aux, bp_s)

    if HWp != HW:
        out3 = out3[:, :, :HW]
    return out3.reshape(N, F_l, H, W)


def _reference(g, x, params, eps=1e-5):
    """Pure-JAX f32 reference of the same (inference-mode BN) forward pass."""
    def conv_bn(inp, w, b, gamma, beta, mean, var):
        y = jnp.einsum("nchw,co->nohw", inp, w) + b[None, :, None, None]
        return gamma[None, :, None, None] * (y - mean[None, :, None, None]) / \
            jnp.sqrt(var[None, :, None, None] + eps) + beta[None, :, None, None]

    g1 = conv_bn(g, params["wg"], params["bg"], params["bn_g_gamma"], params["bn_g_beta"],
                 params["bn_g_mean"], params["bn_g_var"])
    x1 = conv_bn(x, params["wx"], params["bx"], params["bn_x_gamma"], params["bn_x_beta"],
                 params["bn_x_mean"], params["bn_x_var"])
    a = jnp.maximum(g1 + x1, 0.0)
    p = conv_bn(a, params["wp"], params["bp"], params["bn_p_gamma"], params["bn_p_beta"],
                params["bn_p_mean"], params["bn_p_var"])
    psi = jax.nn.sigmoid(p)
    return x * psi


def make_params(key, F_g, F_l, F_int):
    ks = jax.random.split(key, 8)
    return {
        # 1x1 conv weights stored as (Cin, Cout)
        "wg": 0.1 * jax.random.normal(ks[0], (F_g, F_int), jnp.float32),
        "bg": 0.1 * jax.random.normal(ks[1], (F_int,), jnp.float32),
        "wx": 0.1 * jax.random.normal(ks[2], (F_l, F_int), jnp.float32),
        "bx": 0.1 * jax.random.normal(ks[3], (F_int,), jnp.float32),
        "wp": 0.1 * jax.random.normal(ks[4], (F_int, 1), jnp.float32),
        "bp": 0.1 * jax.random.normal(ks[5], (1,), jnp.float32),
        # BatchNorm affine + running stats (inference mode)
        "bn_g_gamma": jnp.ones((F_int,), jnp.float32) * 1.1,
        "bn_g_beta": jnp.ones((F_int,), jnp.float32) * 0.05,
        "bn_g_mean": 0.1 * jax.random.normal(ks[6], (F_int,), jnp.float32),
        "bn_g_var": jnp.ones((F_int,), jnp.float32) * 0.9,
        "bn_x_gamma": jnp.ones((F_int,), jnp.float32) * 0.95,
        "bn_x_beta": jnp.ones((F_int,), jnp.float32) * -0.02,
        "bn_x_mean": 0.1 * jax.random.normal(ks[7], (F_int,), jnp.float32),
        "bn_x_var": jnp.ones((F_int,), jnp.float32) * 1.05,
        "bn_p_gamma": jnp.ones((1,), jnp.float32) * 1.2,
        "bn_p_beta": jnp.ones((1,), jnp.float32) * 0.01,
        "bn_p_mean": jnp.zeros((1,), jnp.float32),
        "bn_p_var": jnp.ones((1,), jnp.float32),
    }


if __name__ == "__main__":
    key = jax.random.PRNGKey(0)
    kg, kx, kp = jax.random.split(key, 3)

    N, F_g, F_l, F_int, H, W = 2, 4, 4, 8, 16, 16
    g = jax.random.normal(kg, (N, F_g, H, W), jnp.float32)
    x = jax.random.normal(kx, (N, F_l, H, W), jnp.float32)
    params = make_params(kp, F_g, F_l, F_int)

    ref = _reference(g, x, params)

    # f32 storage path: tight check against the pure-JAX reference.
    out_f32 = jax.block_until_ready(
        attention_block(g, x, params, storage_dtype=jnp.float32))
    assert out_f32.shape == x.shape and out_f32.dtype == x.dtype
    assert jnp.allclose(out_f32, ref, atol=2e-5, rtol=2e-5), "f32 mismatch vs JAX reference"

    # bf16 storage path (default, bandwidth-optimized): looser tolerance vs f32 reference.
    out_bf16 = jax.block_until_ready(attention_block(g, x, params))
    assert out_bf16.shape == x.shape and out_bf16.dtype == jnp.bfloat16
    max_err = float(jnp.max(jnp.abs(out_bf16.astype(jnp.float32) - ref)))
    assert max_err < 0.12, f"bf16 mismatch vs JAX reference (max abs err {max_err})"

    print("KERNEL_OK")
</pallas_src>

<mosaic_0001>
module attributes {stable_mosaic.version = 11 : i64} {
  func.func @_attention_kernel(%arg0: i32, %arg1: i32, %arg2: memref<1x4x128xf32, #tpu.memory_space<vmem>>, %arg3: memref<1x4x128xf32, #tpu.memory_space<vmem>>, %arg4: memref<8x4xf32, #tpu.memory_space<vmem>>, %arg5: memref<8x4xf32, #tpu.memory_space<vmem>>, %arg6: memref<8x2xf32, #tpu.memory_space<vmem>>, %arg7: memref<1x1xf32, #tpu.memory_space<smem>>, %arg8: memref<1x4x128xf32, #tpu.memory_space<vmem>>) attributes {dimension_semantics = [#tpu.dimension_semantics<parallel>, #tpu.dimension_semantics<parallel>], iteration_bounds = array<i64: 2, 2>, scalar_prefetch = 0 : i64, scratch_operands = 0 : i64, tpu.core_type = #tpu.core_type<tc>, window_params = [{transform_indices = @transform_0, window_bounds = array<i64: 1, 4, 128>}, {transform_indices = @transform_1, window_bounds = array<i64: 1, 4, 128>}, {pipeline_mode = #tpu.pipeline_mode<synchronous>, transform_indices = @transform_2, window_bounds = array<i64: 8, 4>}, {pipeline_mode = #tpu.pipeline_mode<synchronous>, transform_indices = @transform_3, window_bounds = array<i64: 8, 4>}, {pipeline_mode = #tpu.pipeline_mode<synchronous>, transform_indices = @transform_4, window_bounds = array<i64: 8, 2>}, {transform_indices = @transform_5, window_bounds = array<i64: 1, 1>}, {transform_indices = @transform_6, window_bounds = array<i64: 1, 4, 128>}]} {
    %c0 = arith.constant 0 : index
    %c0_0 = arith.constant 0 : index
    %c0_1 = arith.constant 0 : index
    %0 = vector.load %arg2[%c0, %c0_0, %c0_1] : memref<1x4x128xf32, #tpu.memory_space<vmem>>, vector<1x4x128xf32>
    %1 = vector.shape_cast %0 : vector<1x4x128xf32> to vector<4x128xf32>
    %c0_2 = arith.constant 0 : index
    %c0_3 = arith.constant 0 : index
    %c0_4 = arith.constant 0 : index
    %2 = vector.load %arg3[%c0_2, %c0_3, %c0_4] : memref<1x4x128xf32, #tpu.memory_space<vmem>>, vector<1x4x128xf32>
    %3 = vector.shape_cast %2 : vector<1x4x128xf32> to vector<4x128xf32>
    %c0_5 = arith.constant 0 : index
    %c0_6 = arith.constant 0 : index
    %4 = vector.load %arg4[%c0_5, %c0_6] : memref<8x4xf32, #tpu.memory_space<vmem>>, vector<8x4xf32>
    %cst = arith.constant dense<0.000000e+00> : vector<8x128xf32>
    %5 = tpu.matmul %4, %1, %cst {dimension_numbers = #tpu.dot_dimension_numbers<[1], [0], [0], [1], [0, 0, 1, 1], [], []>} : vector<8x4xf32>, vector<4x128xf32>, vector<8x128xf32> -> vector<8x128xf32>
    %c0_7 = arith.constant 0 : index
    %c0_8 = arith.constant 0 : index
    %6 = vector.load %arg5[%c0_7, %c0_8] : memref<8x4xf32, #tpu.memory_space<vmem>>, vector<8x4xf32>
    %cst_9 = arith.constant dense<0.000000e+00> : vector<8x128xf32>
    %7 = tpu.matmul %6, %3, %cst_9 {dimension_numbers = #tpu.dot_dimension_numbers<[1], [0], [0], [1], [0, 0, 1, 1], [], []>} : vector<8x4xf32>, vector<4x128xf32>, vector<8x128xf32> -> vector<8x128xf32>
    %8 = arith.addf %5, %7 : vector<8x128xf32>
    %c0_10 = arith.constant 0 : index
    %c0_11 = arith.constant 0 : index
    %9 = vector.load %arg6[%c0_10, %c0_11] : memref<8x2xf32, #tpu.memory_space<vmem>>, vector<8x1xf32>
    %c0_12 = arith.constant 0 : index
    %c1 = arith.constant 1 : index
    %10 = vector.load %arg6[%c0_12, %c1] : memref<8x2xf32, #tpu.memory_space<vmem>>, vector<8x1xf32>
    %11 = vector.broadcast %9 : vector<8x1xf32> to vector<8x128xf32>
    %12 = arith.addf %8, %11 : vector<8x128xf32>
    %cst_13 = arith.constant 0.000000e+00 : f32
    %13 = vector.broadcast %cst_13 : f32 to vector<8x128xf32>
    %14 = arith.maximumf %12, %13 : vector<8x128xf32>
    %15 = vector.broadcast %10 : vector<8x1xf32> to vector<8x128xf32>
    %16 = arith.mulf %14, %15 : vector<8x128xf32>
    %cst_14 = arith.constant dense<0.000000e+00> : vector<128xf32>
    %17 = vector.multi_reduction <add>, %16, %cst_14 [0] : vector<8x128xf32> to vector<128xf32>
    %18 = vector.shape_cast %17 : vector<128xf32> to vector<1x128xf32>
    %c0_15 = arith.constant 0 : index
    %c0_16 = arith.constant 0 : index
    %19 = memref.load %arg7[%c0_15, %c0_16] : memref<1x1xf32, #tpu.memory_space<smem>>
    %20 = vector.broadcast %19 : f32 to vector<1x128xf32>
    %21 = arith.addf %18, %20 : vector<1x128xf32>
    %22 = arith.negf %21 : vector<1x128xf32>
    %23 = math.exp %22 : vector<1x128xf32>
    %cst_17 = arith.constant 1.000000e+00 : f32
    %24 = vector.broadcast %cst_17 : f32 to vector<1x128xf32>
    %25 = arith.addf %24, %23 : vector<1x128xf32>
    %26 = arith.divf %24, %25 : vector<1x128xf32>
    %27 = vector.broadcast %26 : vector<1x128xf32> to vector<4x128xf32>
    %28 = arith.mulf %3, %27 : vector<4x128xf32>
    %c0_18 = arith.constant 0 : index
    %c0_19 = arith.constant 0 : index
    %c0_20 = arith.constant 0 : index
    %29 = vector.load %arg8[%c0_18, %c0_19, %c0_20] : memref<1x4x128xf32, #tpu.memory_space<vmem>>, vector<1x4x128xf32>
    %30 = vector.shape_cast %29 : vector<1x4x128xf32> to vector<4x128xf32>
    %31 = vector.shape_cast %28 : vector<4x128xf32> to vector<1x4x128xf32>
    tpu.vector_store %arg8[%c0_18, %c0_19, %c0_20], %31 {strides = array<i32>} : memref<1x4x128xf32, #tpu.memory_space<vmem>>, vector<1x4x128xf32>,
    return
  }
  func.func @transform_0(%arg0: i32, %arg1: i32) -> (i32, i32, i32) {
    %c0_i32 = arith.constant 0 : i32
    %c0_i32_0 = arith.constant 0 : i32
    return %arg0, %c0_i32, %arg1 : i32, i32, i32
  }
  func.func @transform_1(%arg0: i32, %arg1: i32) -> (i32, i32, i32) {
    %c0_i32 = arith.constant 0 : i32
    %c0_i32_0 = arith.constant 0 : i32
    return %arg0, %c0_i32, %arg1 : i32, i32, i32
  }
  func.func @transform_2(%arg0: i32, %arg1: i32) -> (i32, i32) {
    %c0_i32 = arith.constant 0 : i32
    %c0_i32_0 = arith.constant 0 : i32
    %c0_i32_1 = arith.constant 0 : i32
    return %c0_i32, %c0_i32_0 : i32, i32
  }
  func.func @transform_3(%arg0: i32, %arg1: i32) -> (i32, i32) {
    %c0_i32 = arith.constant 0 : i32
    %c0_i32_0 = arith.constant 0 : i32
    %c0_i32_1 = arith.constant 0 : i32
    return %c0_i32, %c0_i32_0 : i32, i32
  }
  func.func @transform_4(%arg0: i32, %arg1: i32) -> (i32, i32) {
    %c0_i32 = arith.constant 0 : i32
    %c0_i32_0 = arith.constant 0 : i32
    %c0_i32_1 = arith.constant 0 : i32
    return %c0_i32, %c0_i32_0 : i32, i32
  }
  func.func @transform_5(%arg0: i32, %arg1: i32) -> (i32, i32) {
    %c0_i32 = arith.constant 0 : i32
    %c0_i32_0 = arith.constant 0 : i32
    %c0_i32_1 = arith.constant 0 : i32
    return %c0_i32, %c0_i32_0 : i32, i32
  }
  func.func @transform_6(%arg0: i32, %arg1: i32) -> (i32, i32, i32) {
    %c0_i32 = arith.constant 0 : i32
    %c0_i32_0 = arith.constant 0 : i32
    return %arg0, %c0_i32, %arg1 : i32, i32, i32
  }
}

</mosaic_0001>

<llo_original>
// kernel: tpu_custom_call.1
$region0: #{tpu_custom_call.1}
  #allocation0 [shape = 'u32[]', space=smem, size = 0x4, offset = 0x4, fixed_abs, tag = 'smem constant byte address 0x4 - core index']
  #allocation1 [shape = 'u32[144,128]{1,0:T(1,128)}', space=vmem, size = 0x12000, scoped, tag = 'internal scratch']
  #allocation2 [shape = 'f32[1,1]{1,0:T(1,128)S(6)}', space=smem, size = 0x200, scoped, tag = 'scoped memory for tpu_custom_call.1']
  %s0 = inlined_call_operand.vmem [shape: f32[2,4,256], index: 0, kind: input, shape index: {}]
  %s1 = inlined_call_operand.hbm [shape: f32[2,4,256], index: 1, kind: input, shape index: {}, may-alias: {1,6}]
  %s2 = inlined_call_operand.vmem [shape: f32[8,4], index: 2, kind: input, shape index: {}]
  %s3 = inlined_call_operand.vmem [shape: f32[8,4], index: 3, kind: input, shape index: {}]
  %s4 = inlined_call_operand.vmem [shape: f32[8,2], index: 4, kind: input, shape index: {}]
  %s5 = inlined_call_operand.<no memory space> [shape: f32[1,1], index: 5, kind: input, shape index: {}]
  %s6 = inlined_call_operand.hbm [shape: f32[2,4,256], index: 6, kind: output, shape index: {}, may-alias: {1,6}]
  %s7 = sld [smem:[#allocation0]]
  $region61: #{tpu_custom_call.1} parent=0
    _
  %s9 = ssub.s32 1, %s7
  %s10 = scalar_select 0, %s9, %s7
  %11 = sst [smem:[#allocation2]] %s5
  $region1: #{tpu_custom_call.1} parent=0
    #allocation3 [shape = 'u8[4096]{0}', space=vmem, size = 0x1000, scoped, tag = 'input window, operand 1']
    #allocation4 [shape = 's32[2]{0}', space=sflag, size = 0x8, scoped, tag = 'scoped memory for tpu_custom_call.1']
    #allocation5 [shape = 's32[2]{0}', space=sflag, size = 0x8, scoped, tag = 'scoped memory for tpu_custom_call.1']
    #allocation6 [shape = 'u8[4096]{0}', space=vmem, size = 0x1000, scoped, tag = 'output window, operand 0']
    %12 = vsyncpa [#allocation4], 0
    %s13 = scalar_lea.sflag [#allocation4], 1
    %14 = vsyncpa %s13, 0
    %15 = vsyncpa [#allocation5], 0
    %s16 = scalar_lea.sflag [#allocation5], 1
    %17 = vsyncpa %s16, 0
    loop: start=0, step=1, limit=6
    $region2: #{tpu_custom_call.1} parent=1 // loop_pre_header
      _
    $region3: #{tpu_custom_call.1} parent=1 // loop_header
      %s19 = sphi 0, %s23
      %p20 = scmp.ge.s32.totalorder %s19, 6
      %s26 = sphi 0, %s38
      %s27 = sphi 0, %s34
      %s28 = sphi 0, %s26
      %s29 = sphi 0, %s27
      %s30 = sphi 0, %s28
      %s31 = sphi 0, %s29
      %s43 = sphi 0, %s45
      %s46 = sphi 0, %s43
      %s47 = sphi 0, %s46
      %s63 = sphi 0, %s47
      %s71 = sphi 0, %s73
      %s74 = sphi 0, %s71
      %s75 = sphi 0, %s74
      %s91 = sphi 0, %s75
      %s95 = sphi 0, %s95
      %s97 = sphi 0, %s95
      %s98 = sphi 0, %s97
      %s112 = sphi 0, %s98
      %s116 = sphi 0, %s116
      %s118 = sphi 0, %s116
      %s119 = sphi 0, %s118
      %s133 = sphi 0, %s119
      %s137 = sphi 0, %s137
      %s139 = sphi 0, %s137
      %s140 = sphi 0, %s139
      %s154 = sphi 0, %s140
      %s158 = sphi 0, %s158
      %s160 = sphi 0, %s158
      %s161 = sphi 0, %s160
      %s175 = sphi 0, %s161
      %s183 = sphi 0, %s185
      %s186 = sphi 0, %s183
      %s187 = sphi 0, %s186
      %s203 = sphi 0, %s187
    $region4: #{tpu_custom_call.1} parent=1 // loop_header_branch
      %22 = sbr.rel (%p20) target = $region8
    $region5: #{tpu_custom_call.1} parent=1 // loop_body
      %s24 = ssub.s32 %s19, 1
      %s25 = ssub.s32 %s19, 2
      %s32 = sadd.s32 1, %s27
      %p33 = scmp.ge.s32.totalorder %s32, 2
      %s34 = scalar_select %p33, 0, %s32
      %s35 = sadd.s32 1, %s26
      %s36 = scalar_select %p33, %s35, %s26
      %p37 = scmp.ge.s32.totalorder %s36, 2
      %s38 = scalar_select %p37, 0, %s36
      %s39 = ssub.s32 %s26, %s38
      %s40 = ssub.s32 %s27, %s34
      %s41 = sor.u32 %s39, %s40
      %p42 = scmp.eq.s32.totalorder %s41, 0
      %s44 = sadd.s32 %s43, 1
      %s45 = scalar_select %p42, %s43, %s44
      %p48 = pneg %p42
      %p49 = scmp.eq.s32.totalorder %s19, 3
      %p50 = por %p48, %p49
      %p51 = scmp.ne.s32.totalorder %s43, %s46
      %p52 = scmp.eq.s32.totalorder %s19, 0
      %p53 = por %p51, %p52
      %p54 = scmp.ne.s32.totalorder %s43, %s46
      %p55 = scmp.eq.s32.totalorder %s24, 3
      %p56 = por %p54, %p55
      %p57 = scmp.ne.s32.totalorder %s46, %s47
      %p58 = scmp.eq.s32.totalorder %s24, 0
      %p59 = por %p57, %p58
      %p60 = scmp.ne.s32.totalorder %s46, %s47
      %p61 = scmp.eq.s32.totalorder %s25, 3
      %p62 = por %p60, %p61
      %p64 = scmp.ne.s32.totalorder %s47, %s63
      %p65 = scmp.eq.s32.totalorder %s25, 0
      %p66 = por %p64, %p65
      %s67 = ssub.s32 %s26, %s38
      %s68 = ssub.s32 %s27, %s34
      %s69 = sor.u32 %s67, %s68
      %p70 = scmp.eq.s32.totalorder %s69, 0
      %s72 = sadd.s32 %s71, 1
      %s73 = scalar_select %p70, %s71, %s72
      %p76 = pneg %p70
      %p77 = scmp.eq.s32.totalorder %s19, 3
      %p78 = por %p76, %p77
      %p79 = scmp.ne.s32.totalorder %s71, %s74
      %p80 = scmp.eq.s32.totalorder %s19, 0
      %p81 = por %p79, %p80
      %p82 = scmp.ne.s32.totalorder %s71, %s74
      %p83 = scmp.eq.s32.totalorder %s24, 3
      %p84 = por %p82, %p83
      %p85 = scmp.ne.s32.totalorder %s74, %s75
      %p86 = scmp.eq.s32.totalorder %s24, 0
      %p87 = por %p85, %p86
      %p88 = scmp.ne.s32.totalorder %s74, %s75
      %p89 = scmp.eq.s32.totalorder %s25, 3
      %p90 = por %p88, %p89
      %p92 = scmp.ne.s32.totalorder %s75, %s91
      %p93 = scmp.eq.s32.totalorder %s25, 0
      %p94 = por %p92, %p93
      %s96 = sadd.s32 %s95, 1
      %p99 = scmp.eq.s32.totalorder %s19, 3
      %p100 = scmp.ne.s32.totalorder %s95, %s97
      %p101 = scmp.eq.s32.totalorder %s19, 0
      %p102 = por %p100, %p101
      %p103 = scmp.ne.s32.totalorder %s95, %s97
      %p104 = scmp.eq.s32.totalorder %s24, 3
      %p105 = por %p103, %p104
      %p106 = scmp.ne.s32.totalorder %s97, %s98
      %p107 = scmp.eq.s32.totalorder %s24, 0
      %p108 = por %p106, %p107
      %p109 = scmp.ne.s32.totalorder %s97, %s98
      %p110 = scmp.eq.s32.totalorder %s25, 3
      %p111 = por %p109, %p110
      %p113 = scmp.ne.s32.totalorder %s98, %s112
      %p114 = scmp.eq.s32.totalorder %s25, 0
      %p115 = por %p113, %p114
      %s117 = sadd.s32 %s116, 1
      %p120 = scmp.eq.s32.totalorder %s19, 3
      %p121 = scmp.ne.s32.totalorder %s116, %s118
      %p122 = scmp.eq.s32.totalorder %s19, 0
      %p123 = por %p121, %p122
      %p124 = scmp.ne.s32.totalorder %s116, %s118
      %p125 = scmp.eq.s32.totalorder %s24, 3
      %p126 = por %p124, %p125
      %p127 = scmp.ne.s32.totalorder %s118, %s119
      %p128 = scmp.eq.s32.totalorder %s24, 0
      %p129 = por %p127, %p128
      %p130 = scmp.ne.s32.totalorder %s118, %s119
      %p131 = scmp.eq.s32.totalorder %s25, 3
      %p132 = por %p130, %p131
      %p134 = scmp.ne.s32.totalorder %s119, %s133
      %p135 = scmp.eq.s32.totalorder %s25, 0
      %p136 = por %p134, %p135
      %s138 = sadd.s32 %s137, 1
      %p141 = scmp.eq.s32.totalorder %s19, 3
      %p142 = scmp.ne.s32.totalorder %s137, %s139
      %p143 = scmp.eq.s32.totalorder %s19, 0
      %p144 = por %p142, %p143
      %p145 = scmp.ne.s32.totalorder %s137, %s139
      %p146 = scmp.eq.s32.totalorder %s24, 3
      %p147 = por %p145, %p146
      %p148 = scmp.ne.s32.totalorder %s139, %s140
      %p149 = scmp.eq.s32.totalorder %s24, 0
      %p150 = por %p148, %p149
      %p151 = scmp.ne.s32.totalorder %s139, %s140
      %p152 = scmp.eq.s32.totalorder %s25, 3
      %p153 = por %p151, %p152
      %p155 = scmp.ne.s32.totalorder %s140, %s154
      %p156 = scmp.eq.s32.totalorder %s25, 0
      %p157 = por %p155, %p156
      %s159 = sadd.s32 %s158, 1
      %p162 = scmp.eq.s32.totalorder %s19, 3
      %p163 = scmp.ne.s32.totalorder %s158, %s160
      %p164 = scmp.eq.s32.totalorder %s19, 0
      %p165 = por %p163, %p164
      %p166 = scmp.ne.s32.totalorder %s158, %s160
      %p167 = scmp.eq.s32.totalorder %s24, 3
      %p168 = por %p166, %p167
      %p169 = scmp.ne.s32.totalorder %s160, %s161
      %p170 = scmp.eq.s32.totalorder %s24, 0
      %p171 = por %p169, %p170
      %p172 = scmp.ne.s32.totalorder %s160, %s161
      %p173 = scmp.eq.s32.totalorder %s25, 3
      %p174 = por %p172, %p173
      %p176 = scmp.ne.s32.totalorder %s161, %s175
      %p177 = scmp.eq.s32.totalorder %s25, 0
      %p178 = por %p176, %p177
      %s179 = ssub.s32 %s26, %s38
      %s180 = ssub.s32 %s27, %s34
      %s181 = sor.u32 %s179, %s180
      %p182 = scmp.eq.s32.totalorder %s181, 0
      %s184 = sadd.s32 %s183, 1
      %s185 = scalar_select %p182, %s183, %s184
      %p188 = pneg %p182
      %p189 = scmp.eq.s32.totalorder %s19, 3
      %p190 = por %p188, %p189
      %p191 = scmp.ne.s32.totalorder %s183, %s186
      %p192 = scmp.eq.s32.totalorder %s19, 0
      %p193 = por %p191, %p192
      %p194 = scmp.ne.s32.totalorder %s183, %s186
      %p195 = scmp.eq.s32.totalorder %s24, 3
      %p196 = por %p194, %p195
      %p197 = scmp.ne.s32.totalorder %s186, %s187
      %p198 = scmp.eq.s32.totalorder %s24, 0
      %p199 = por %p197, %p198
      %p200 = scmp.ne.s32.totalorder %s186, %s187
      %p201 = scmp.eq.s32.totalorder %s25, 3
      %p202 = por %p200, %p201
      %p204 = scmp.ne.s32.totalorder %s187, %s203
      %p205 = scmp.eq.s32.totalorder %s25, 0
      %p206 = por %p204, %p205
      %p207 = scmp.le.s32.totalorder 1, %s19
      %p208 = scmp.lt.s32.totalorder %s19, 5
      %p209 = pnand %p207, %p208
      %p210 = pneg %p209
      // Predicated region
      $region9: #{tpu_custom_call.1} parent=5 // pred_check
        _
      $region10: #{tpu_custom_call.1} parent=5 // pred_check_branch
        %212 = sbr.rel (%p209) target = $region12
      $region11: #{tpu_custom_call.1} parent=5 // pred_region
        %s213 = ssub.s32 %s19, 1
        // Predicated region
        $region13: #{tpu_custom_call.1} parent=11 // pred_check
          %p214 = pneg %p108
        $region14: #{tpu_custom_call.1} parent=11 // pred_check_branch
          %216 = sbr.rel (%p214) target = $region16
        $region15: #{tpu_custom_call.1} parent=11 // pred_region
          _
        $region16: #{tpu_custom_call.1} parent=11 // pred_fallthru
          _
        // Predicated region
        $region17: #{tpu_custom_call.1} parent=11 // pred_check
          %p217 = pneg %p129
        $region18: #{tpu_custom_call.1} parent=11 // pred_check_branch
          %219 = sbr.rel (%p217) target = $region20
        $region19: #{tpu_custom_call.1} parent=11 // pred_region
          _
        $region20: #{tpu_custom_call.1} parent=11 // pred_fallthru
          _
        // Predicated region
        $region21: #{tpu_custom_call.1} parent=11 // pred_check
          %p220 = pneg %p150
        $region22: #{tpu_custom_call.1} parent=11 // pred_check_branch
          %222 = sbr.rel (%p220) target = $region24
        $region23: #{tpu_custom_call.1} parent=11 // pred_region
          _
        $region24: #{tpu_custom_call.1} parent=11 // pred_fallthru
          _
        // Predicated region
        $region25: #{tpu_custom_call.1} parent=11 // pred_check
          %p223 = pneg %p171
        $region26: #{tpu_custom_call.1} parent=11 // pred_check_branch
          %225 = sbr.rel (%p223) target = $region28
        $region27: #{tpu_custom_call.1} parent=11 // pred_region
          _
        $region28: #{tpu_custom_call.1} parent=11 // pred_fallthru
          _
      $region12: #{tpu_custom_call.1} parent=5 // pred_fallthru
        _
      %p226 = scmp.lt.s32.totalorder %s19, 4
      // Predicated region
      $region29: #{tpu_custom_call.1} parent=5 // pred_check
        %p227 = pneg %p226
      $region30: #{tpu_custom_call.1} parent=5 // pred_check_branch
        %229 = sbr.rel (%p227) target = $region32
      $region31: #{tpu_custom_call.1} parent=5 // pred_region
        // Predicated region
        $region33: #{tpu_custom_call.1} parent=31 // pred_check
          %p230 = pneg %p53
        $region34: #{tpu_custom_call.1} parent=31 // pred_check_branch
          %232 = sbr.rel (%p230) target = $region36
        $region35: #{tpu_custom_call.1} parent=31 // pred_region
          %p233 = scmp.lt.s32.totalorder %s26, 1
          %s234 = scalar_select %p233, %s26, 1
          %p235 = scmp.lt.s32.totalorder %s27, 1
          %s236 = scalar_select %p235, %s27, 1
          %s237 = smul.addr %s234, 2
          %s238 = sadd.s32 %s236, %s237
          %s239 = smul.addr %s238, 4
          %s240 = scalar_lea.vmem %s0, %s239
        $region36: #{tpu_custom_call.1} parent=31 // pred_fallthru
          _
        // Predicated region
        $region37: #{tpu_custom_call.1} parent=31 // pred_check
          %p241 = pneg %p81
        $region38: #{tpu_custom_call.1} parent=31 // pred_check_branch
          %243 = sbr.rel (%p241) target = $region40
        $region39: #{tpu_custom_call.1} parent=31 // pred_region
          %s244 = sand.u32 %s71, 1
          %s245 = scalar_lea.sflag [#allocation4], %s244
          %s246 = sand.u32 %s71, 1
          %s247 = smul.addr %s246, 4
          %s248 = scalar_lea.vmem [#allocation3], %s247
          %s250 = ssub.s32 64, 64
          %251 = vsyncadd %s245, %s250
          %s252 = smul.addr %s26, 2
          %s253 = sadd.s32 %s27, %s252
          %s254 = smul.addr %s253, 64
          %s255 = scalar_lea.hbm %s1, %s254
          %s257 = sshll.u32 %s248, 4
          %s258 = int_to_ptr.vmem [resolvable:$true] %s257
          %260 = dma.hbm_to_vmem [thread:$0]  %s255, 64, %s258, %s245
        $region40: #{tpu_custom_call.1} parent=31 // pred_fallthru
          _
      $region32: #{tpu_custom_call.1} parent=5 // pred_fallthru
        _
      %p261 = scmp.le.s32.totalorder 1, %s19
      %p262 = scmp.lt.s32.totalorder %s19, 5
      %p263 = pnand %p261, %p262
      %p264 = pneg %p263
      // Predicated region
      $region41: #{tpu_custom_call.1} parent=5 // pred_check
        _
      $region42: #{tpu_custom_call.1} parent=5 // pred_check_branch
        %266 = sbr.rel (%p263) target = $region44
      $region43: #{tpu_custom_call.1} parent=5 // pred_region
        %s267 = ssub.s32 %s19, 1
        %s268 = sand.u32 %s74, 1
        %s269 = scalar_lea.sflag [#allocation4], %s268
        %s270 = sand.u32 %s74, 1
        %s271 = smul.addr %s270, 4
        %s272 = scalar_lea.vmem [#allocation3], %s271
        // Predicated region
        $region45: #{tpu_custom_call.1} parent=43 // pred_check
          %p273 = pneg %p87
        $region46: #{tpu_custom_call.1} parent=43 // pred_check_branch
          %275 = sbr.rel (%p273) target = $region48
        $region47: #{tpu_custom_call.1} parent=43 // pred_region
          %276 = dma.done %s269, 64
        $region48: #{tpu_custom_call.1} parent=43 // pred_fallthru
          _
        %p277 = scmp.lt.s32.totalorder %s28, 1
        %s278 = scalar_select %p277, %s28, 1
        %p279 = scmp.lt.s32.totalorder %s29, 1
        %s280 = scalar_select %p279, %s29, 1
        %s281 = smul.addr %s278, 2
        %s282 = sadd.s32 %s280, %s281
        %s283 = smul.addr %s282, 4
        %s284 = scalar_lea.vmem %s0, %s283
        %p285 = pneg %p59
        %p286 = pneg %p56
        %s287 = sand.u32 %s74, 1
        %s288 = scalar_lea.sflag [#allocation4], %s287
        %s289 = sand.u32 %s74, 1
        %s290 = smul.addr %s289, 4
        %s291 = scalar_lea.vmem [#allocation3], %s290
        %p292 = pneg %p87
        %p293 = pneg %p84
        %p294 = pneg %p108
        %p295 = pneg %p105
        %p296 = pneg %p129
        %p297 = pneg %p126
        %p298 = pneg %p150
        %p299 = pneg %p147
        %p300 = pneg %p171
        %p301 = pneg %p168
        %p302 = pneg %p199
        %p303 = pneg %p196
        %s304 = sand.u32 %s186, 1
        %s305 = scalar_lea.sflag [#allocation5], %s304
        %s306 = sand.u32 %s186, 1
        %s307 = smul.addr %s306, 4
        %s308 = scalar_lea.vmem [#allocation6], %s307
        %p309 = scmp.lt.s32.totalorder %s28, 1
        %s310 = scalar_select %p309, %s28, 1
        %p311 = scmp.lt.s32.totalorder %s29, 1
        %s312 = scalar_select %p311, %s29, 1
        %s313 = smul.addr %s310, 2
        %s314 = sadd.s32 %s312, %s313
        %s315 = smul.addr %s314, 4
        %s316 = scalar_lea.vmem %s0, %s315
        %v317 = vld [vmem:[%s316] sm:$0xf]
        %v318 = vld [vmem:[%s272] sm:$0xf]
        %v319 = vld [vmem:[%s2] sm:$0xff]
        %v320 = vld [vmem:[%s3] sm:$0xff]
        %vm321 = vcmask 31744
        %v323 = vsel %vm321, %v320, 0
        %vm325 = vcmask 1043456
        %v327 = vsel %vm325, %v318, 0
        %329 = vmatprep.subr.mxu0 0.0
        %330 = vmatpush1.msra.mxu0 %v327
        %331 = vmatprep.subr.mxu0 0.0
        %332 = vmatpush1.msra.mxu0 0.0
        %333 = vmatprep.subr.mxu0 0.0
        %334 = vmatpush1.msra.mxu0 0.0
        %335 = vmatprep.subr.mxu0 0.0
        %336 = vmatpush1.msra.mxu0 0.0
        %337 = vmatprep.subr.mxu0 0.0
        %338 = vmatpush1.msra.mxu0 0.0
        %339 = vmatprep.subr.mxu0 0.0
        %340 = vmatpush1.msra.mxu0 0.0
        %341 = vmatprep.subr.mxu0 0.0
        %342 = vmatpush1.msra.mxu0 0.0
        %343 = vmatprep.subr.mxu0 0.0
        %344 = vmatpush1.msra.mxu0 0.0
        %345 = vmatprep.subr.mxu0 0.0
        %346 = vmatpush1.msra.mxu0 0.0
        %347 = vmatprep.subr.mxu0 0.0
        %348 = vmatpush1.msra.mxu0 0.0
        %349 = vmatprep.subr.mxu0 0.0
        %350 = vmatpush1.msra.mxu0 0.0
        %351 = vmatprep.subr.mxu0 0.0
        %352 = vmatpush1.msra.mxu0 0.0
        %353 = vmatprep.subr.mxu0 0.0
        %354 = vmatpush1.msra.mxu0 0.0
        %355 = vmatprep.subr.mxu0 0.0
        %356 = vmatpush1.msra.mxu0 0.0
        %357 = vmatprep.subr.mxu0 0.0
        %358 = vmatpush1.msra.mxu0 0.0
        %359 = vmatprep.subr.mxu0 0.0
        %360 = vmatpush1.msra.mxu0 0.0
        %361 = vmatprep.subr.mxu0 0.0
        %362 = vmatpush1.msra.mxu0 0.0
        %363 = vmatprep.subr.mxu0 0.0
        %364 = vmatpush1.msra.mxu0 0.0
        %365 = vmatprep.subr.mxu0 0.0
        %366 = vmatpush1.msra.mxu0 0.0
        %367 = vmatprep.subr.mxu0 0.0
        %368 = vmatpush1.msra.mxu0 0.0
        %369 = vmatprep.subr.mxu0 0.0
        %370 = vmatpush1.msra.mxu0 0.0
        %371 = vmatprep.subr.mxu0 0.0
        %372 = vmatpush1.msra.mxu0 0.0
        %373 = vmatprep.subr.mxu0 0.0
        %374 = vmatpush1.msra.mxu0 0.0
        %375 = vmatprep.subr.mxu0 0.0
        %376 = vmatpush1.msra.mxu0 0.0
        %377 = vmatprep.subr.mxu0 0.0
        %378 = vmatpush1.msra.mxu0 0.0
        %379 = vmatprep.subr.mxu0 0.0
        %380 = vmatpush1.msra.mxu0 0.0
        %381 = vmatprep.subr.mxu0 0.0
        %382 = vmatpush1.msra.mxu0 0.0
        %383 = vmatprep.subr.mxu0 0.0
        %384 = vmatpush1.msra.mxu0 0.0
        %385 = vmatprep.subr.mxu0 0.0
        %386 = vmatpush1.msra.mxu0 0.0
        %387 = vmatprep.subr.mxu0 0.0
        %388 = vmatpush1.msra.mxu0 0.0
        %389 = vmatprep.subr.mxu0 0.0
        %390 = vmatpush1.msra.mxu0 0.0
        %391 = vmatprep.subr.mxu0 0.0
        %392 = vmatpush1.msra.mxu0 0.0
        %393 = vmatprep.mubr.f32.mxu0 0.0
        %394 = vmatmul.mubr.f32.gmra.mrb[0].mxu0 %v323
        %v395 = vpop.f32.mrb[0].mxu0
        %v396 = vadd.f32 0.0, %v395
        %v397 = vpop.f32.mrb[0].mxu0
        %398 = vdwg.mxu0
        %v400 = vsel %vm321, %v319, 0
        %v403 = vsel %vm325, %v317, 0
        %405 = vmatprep.subr.mxu0 0.0
        %406 = vmatpush1.msra.mxu0 %v403
        %407 = vmatprep.subr.mxu0 0.0
        %408 = vmatpush1.msra.mxu0 0.0
        %409 = vmatprep.subr.mxu0 0.0
        %410 = vmatpush1.msra.mxu0 0.0
        %411 = vmatprep.subr.mxu0 0.0
        %412 = vmatpush1.msra.mxu0 0.0
        %413 = vmatprep.subr.mxu0 0.0
        %414 = vmatpush1.msra.mxu0 0.0
        %415 = vmatprep.subr.mxu0 0.0
        %416 = vmatpush1.msra.mxu0 0.0
        %417 = vmatprep.subr.mxu0 0.0
        %418 = vmatpush1.msra.mxu0 0.0
        %419 = vmatprep.subr.mxu0 0.0
        %420 = vmatpush1.msra.mxu0 0.0
        %421 = vmatprep.subr.mxu0 0.0
        %422 = vmatpush1.msra.mxu0 0.0
        %423 = vmatprep.subr.mxu0 0.0
        %424 = vmatpush1.msra.mxu0 0.0
        %425 = vmatprep.subr.mxu0 0.0
        %426 = vmatpush1.msra.mxu0 0.0
        %427 = vmatprep.subr.mxu0 0.0
        %428 = vmatpush1.msra.mxu0 0.0
        %429 = vmatprep.subr.mxu0 0.0
        %430 = vmatpush1.msra.mxu0 0.0
        %431 = vmatprep.subr.mxu0 0.0
        %432 = vmatpush1.msra.mxu0 0.0
        %433 = vmatprep.subr.mxu0 0.0
        %434 = vmatpush1.msra.mxu0 0.0
        %435 = vmatprep.subr.mxu0 0.0
        %436 = vmatpush1.msra.mxu0 0.0
        %437 = vmatprep.subr.mxu0 0.0
        %438 = vmatpush1.msra.mxu0 0.0
        %439 = vmatprep.subr.mxu0 0.0
        %440 = vmatpush1.msra.mxu0 0.0
        %441 = vmatprep.subr.mxu0 0.0
        %442 = vmatpush1.msra.mxu0 0.0
        %443 = vmatprep.subr.mxu0 0.0
        %444 = vmatpush1.msra.mxu0 0.0
        %445 = vmatprep.subr.mxu0 0.0
        %446 = vmatpush1.msra.mxu0 0.0
        %447 = vmatprep.subr.mxu0 0.0
        %448 = vmatpush1.msra.mxu0 0.0
        %449 = vmatprep.subr.mxu0 0.0
        %450 = vmatpush1.msra.mxu0 0.0
        %451 = vmatprep.subr.mxu0 0.0
        %452 = vmatpush1.msra.mxu0 0.0
        %453 = vmatprep.subr.mxu0 0.0
        %454 = vmatpush1.msra.mxu0 0.0
        %455 = vmatprep.subr.mxu0 0.0
        %456 = vmatpush1.msra.mxu0 0.0
        %457 = vmatprep.subr.mxu0 0.0
        %458 = vmatpush1.msra.mxu0 0.0
        %459 = vmatprep.subr.mxu0 0.0
        %460 = vmatpush1.msra.mxu0 0.0
        %461 = vmatprep.subr.mxu0 0.0
        %462 = vmatpush1.msra.mxu0 0.0
        %463 = vmatprep.subr.mxu0 0.0
        %464 = vmatpush1.msra.mxu0 0.0
        %465 = vmatprep.subr.mxu0 0.0
        %466 = vmatpush1.msra.mxu0 0.0
        %467 = vmatprep.subr.mxu0 0.0
        %468 = vmatpush1.msra.mxu0 0.0
        %469 = vmatprep.mubr.f32.mxu0 0.0
        %470 = vmatmul.mubr.f32.gmra.mrb[0].mxu0 %v400
        %v471 = vpop.f32.mrb[0].mxu0
        %v472 = vadd.f32 %v396, %v471
        %v473 = vpop.f32.mrb[0].mxu0
        %474 = vdwg.mxu0
        %v475 = vld [vmem:[%s4] sm:$0xff]
        %477 = vset.pattern.permute.xlu0 0
        %478 = vperm.xlu0 %477, %v475
        %v479 = vpop.permute.xlu0 %478
        %v481 = vadd.f32 %v472, %v479
        %v482 = vmax.f32 %v481, 0.0
        %483 = vset.pattern.permute.xlu0 1
        %484 = vperm.xlu0 %483, %v475
        %v485 = vpop.permute.xlu0 %484
        %v487 = vmul.f32 %v482, %v485
        %v488 = vrot.slane %v487, 4
        %v489 = vadd.f32 %v487, %v488
        %v490 = vrot.slane %v489, 2
        %v491 = vadd.f32 %v489, %v490
        %v492 = vrot.slane %v491, 1
        %v493 = vadd.f32 %v491, %v492
        %s494 = sld [smem:[#allocation2]]
        %v495 = vstv %s494
        %v496 = vadd.f32 %v493, %v495
        %v497 = vxor.u32 %v496, 2147483648
        %v498 = vmul.f32 %v497, 1.442695
        %v499 = vpow.pop %v498
        %v500 = vadd.f32 %v499, 1.0
        %v501 = vrcp.pop %v500
        %v502 = vmul.f32 1.0, %v501
        %v503 = vmul.f32 %v318, %v502
        %504 = vst [vmem:[%s308] sm:$0xf] %v503
        %s505 = sand.u32 %s186, 1
        %s506 = scalar_lea.sflag [#allocation5], %s505
        %s507 = sand.u32 %s186, 1
        %s508 = smul.addr %s507, 4
        %s509 = scalar_lea.vmem [#allocation6], %s508
        // Predicated region
        $region49: #{tpu_custom_call.1} parent=43 // pred_check
          %p510 = pneg %p196
        $region50: #{tpu_custom_call.1} parent=43 // pred_check_branch
          %512 = sbr.rel (%p510) target = $region52
        $region51: #{tpu_custom_call.1} parent=43 // pred_region
          %s514 = ssub.s32 64, 64
          %515 = vsyncadd %s506, %s514
          %s516 = smul.addr %s28, 2
          %s517 = sadd.s32 %s29, %s516
          %s518 = smul.addr %s517, 64
          %s519 = scalar_lea.hbm %s6, %s518
          %s521 = sshll.u32 %s509, 4
          %s522 = int_to_ptr.vmem [resolvable:$true] %s521
          %524 = dma.vmem_to_hbm [thread:$0]  %s522, 64, %s519, %s506
        $region52: #{tpu_custom_call.1} parent=43 // pred_fallthru
          _
      $region44: #{tpu_custom_call.1} parent=5 // pred_fallthru
        _
      %p525 = scmp.le.s32.totalorder 2, %s19
      // Predicated region
      $region53: #{tpu_custom_call.1} parent=5 // pred_check
        %p526 = pneg %p525
      $region54: #{tpu_custom_call.1} parent=5 // pred_check_branch
        %528 = sbr.rel (%p526) target = $region56
      $region55: #{tpu_custom_call.1} parent=5 // pred_region
        %s529 = ssub.s32 %s19, 2
        // Predicated region
        $region57: #{tpu_custom_call.1} parent=55 // pred_check
          %p530 = pneg %p202
        $region58: #{tpu_custom_call.1} parent=55 // pred_check_branch
          %532 = sbr.rel (%p530) target = $region60
        $region59: #{tpu_custom_call.1} parent=55 // pred_region
          %s533 = sand.u32 %s187, 1
          %s534 = scalar_lea.sflag [#allocation5], %s533
          %s535 = sand.u32 %s187, 1
          %s536 = smul.addr %s535, 4
          %s537 = scalar_lea.vmem [#allocation6], %s536
          %538 = dma.done %s534, 64
        $region60: #{tpu_custom_call.1} parent=55 // pred_fallthru
          _
      $region56: #{tpu_custom_call.1} parent=5 // pred_fallthru
        _
    $region6: #{tpu_custom_call.1} parent=1 // loop_footer
      %s23 = sadd.s32 1, %s19
    $region7: #{tpu_custom_call.1} parent=1 // loop_footer_branch
      %18 = sbr.rel target = $region3
    $region8: #{tpu_custom_call.1} parent=1 // loop_exit
      _
    %539 = vsyncpa [#allocation4], 1
    %s540 = scalar_lea.sflag [#allocation4], 1
    %541 = vsyncpa %s540, 1
    %542 = vsyncpa [#allocation5], 1
    %s543 = scalar_lea.sflag [#allocation5], 1
    %544 = vsyncpa %s543, 1

</llo_original>
